<compile_context>
chip_gen: v5e
topology: v5e:2x2
jax: 0.10.0
libtpu: 0.0.40
codegen_flags: <defaults>
</compile_context>

<pallas_src>
import jax
import jax.numpy as jnp
from jax import lax
from jax.experimental import pallas as pl
from jax.experimental.pallas import tpu as pltpu


def _round_up(n, m):
    return ((n + m - 1) // m) * m


def _vmem_capacity_bytes():
    try:
        return int(pltpu.get_tpu_info().vmem_capacity_bytes)
    except Exception:
        return 64 * 1024 * 1024  # conservative fallback (v7x per-TC VMEM)


def _vmem_block_budget():
    # ~40% of physical VMEM for our pipelined blocks; leaves headroom for
    # compiler scratch on every generation (v5e/v6e: 128 MiB, v7x: 64 MiB).
    return int(_vmem_capacity_bytes() * 0.4)


def _compiler_params(dimension_semantics):
    cap = _vmem_capacity_bytes()
    return pltpu.CompilerParams(
        dimension_semantics=dimension_semantics,
        # Raise the scoped-VMEM limit modestly above the default without
        # approaching physical capacity on any generation.
        vmem_limit_bytes=min(int(cap * 0.7), 64 * 1024 * 1024),
    )


def _dot_xt(x, w):
    # (m, k) x (n, k) -> (m, n) == x @ w.T; contracts on the last dim of both
    # operands so W keeps its PyTorch (out_features, in_features) layout.
    return lax.dot_general(
        x,
        w,
        dimension_numbers=(((1,), (1,)), ((), ())),
        preferred_element_type=jnp.float32,
    )


# ----------------------------------------------------------------------------
# Small path: whole problem in VMEM, single invocation, no grid, no pad/slice.
# ----------------------------------------------------------------------------
def _small_kernel(x_ref, w_ref, o_ref):
    o_ref[...] = _dot_xt(x_ref[...], w_ref[...])


def _projector_small(x, weight):
    B, _ = x.shape
    C, _ = weight.shape
    return pl.pallas_call(
        _small_kernel,
        out_shape=jax.ShapeDtypeStruct((B, C), jnp.float32),
        in_specs=[
            pl.BlockSpec(memory_space=pltpu.MemorySpace.VMEM),
            pl.BlockSpec(memory_space=pltpu.MemorySpace.VMEM),
        ],
        out_specs=pl.BlockSpec(memory_space=pltpu.MemorySpace.VMEM),
    )(x, weight)


# ----------------------------------------------------------------------------
# Weight-resident path: W fetched from HBM once, batch streamed in (tm, D)
# tiles.  Typical projector-head shapes (C small, D moderate) land here.
# ----------------------------------------------------------------------------
def _wres_kernel(x_ref, w_ref, o_ref):
    o_ref[...] = _dot_xt(x_ref[...], w_ref[...])


def _projector_weight_resident(x, weight, *, tm=None):
    B, D = x.shape
    C, _ = weight.shape
    if tm is None:
        tm = B if B <= 512 else 512
        budget = _vmem_block_budget()

        # One resident copy of W + double-buffered x/out row blocks.
        def foot(t):
            return 4 * (C * D + 2 * (t * D + t * C))

        while tm > 8 and foot(tm) > budget:
            tm = max(8, _round_up(tm // 2, 8))

    grid = (pl.cdiv(B, tm),)
    return pl.pallas_call(
        _wres_kernel,
        out_shape=jax.ShapeDtypeStruct((B, C), jnp.float32),
        grid=grid,
        in_specs=[
            pl.BlockSpec((tm, D), lambda i: (i, 0)),
            # Constant block index: Pallas skips the DMA when the block index
            # does not change, so W is read from HBM exactly once.
            pl.BlockSpec((C, D), lambda i: (0, 0)),
        ],
        out_specs=pl.BlockSpec((tm, C), lambda i: (i, 0)),
        compiler_params=_compiler_params(("parallel",)),
    )(x, weight)


# ----------------------------------------------------------------------------
# Fully tiled path: accumulate directly into the resident output tile.
# ----------------------------------------------------------------------------
def _tiled_kernel(x_ref, w_ref, o_ref):
    # Output block index (i, j) is constant along k -> o_ref stays resident in
    # VMEM across the reduction; no separate accumulator scratch is needed
    # because the output dtype is already f32.
    @pl.when(pl.program_id(2) == 0)
    def _init():
        o_ref[...] = jnp.zeros_like(o_ref)

    o_ref[...] += _dot_xt(x_ref[...], w_ref[...])


def _projector_tiled(x, weight, *, tm=None, tn=None, tk=None):
    B, D = x.shape
    C, _ = weight.shape
    budget = _vmem_block_budget()

    if tm is None:
        tm = B if B <= 512 else 512
    if tn is None:
        tn = C if C <= 512 else 512
    if tk is None:
        tk = D if D <= 1024 else 1024

    # Shrink tk (kept a multiple of 128) if the double-buffered blocks would
    # exceed the per-generation VMEM budget (e.g. v7x's smaller VMEM).
    def foot(tk_):
        return 4 * 2 * (tm * tk_ + tn * tk_ + tm * tn)

    while tk > 128 and tk % 256 == 0 and foot(tk) > budget:
        tk //= 2

    # Only the contraction dim needs zero padding for correctness; ragged B/C
    # edge blocks only produce values outside the valid output region.
    if tk < D and D % tk != 0:
        Dp = _round_up(D, tk)
        x = jnp.pad(x, ((0, 0), (0, Dp - D)))
        weight = jnp.pad(weight, ((0, 0), (0, Dp - D)))
        D = Dp

    grid = (pl.cdiv(B, tm), pl.cdiv(C, tn), D // tk)
    return pl.pallas_call(
        _tiled_kernel,
        out_shape=jax.ShapeDtypeStruct((B, C), jnp.float32),
        grid=grid,
        in_specs=[
            pl.BlockSpec((tm, tk), lambda i, j, k: (i, k)),  # x rows
            pl.BlockSpec((tn, tk), lambda i, j, k: (j, k)),  # W rows (C, D)
        ],
        out_specs=pl.BlockSpec((tm, tn), lambda i, j, k: (i, j)),
        compiler_params=_compiler_params(("parallel", "parallel", "arbitrary")),
    )(x, weight)


# ----------------------------------------------------------------------------
# Public entry point.
# ----------------------------------------------------------------------------
def projector_forward(x, weight):
    """Projector(version=1) forward: y = x @ weight.T (no bias), f32."""
    B, D = x.shape
    C, D2 = weight.shape
    assert D == D2, "weight in_features must match x features"
    budget = _vmem_block_budget()

    small_bytes = 4 * (B * D + C * D + B * C)
    if small_bytes <= min(budget, 8 * 1024 * 1024):
        return _projector_small(x, weight)
    if 4 * C * D <= budget // 4:
        return _projector_weight_resident(x, weight)
    return _projector_tiled(x, weight)


def init_projector_weight(key, semantic_emb_size, num_classes):
    # Kaiming normal, mode='fan_out', nonlinearity='relu':
    # for a Linear weight (out, in): fan_out = out_features, std = sqrt(2/fan_out).
    std = (2.0 / num_classes) ** 0.5
    return std * jax.random.normal(
        key, (num_classes, semantic_emb_size), dtype=jnp.float32
    )


if __name__ == "__main__":
    # Module-native small shapes: semantic_emb_size=32, num_classes=4, batch=8.
    semantic_emb_size = 32
    num_classes = 4
    batch = 8

    key = jax.random.PRNGKey(0)
    kx, kw, kx2, kw2, kx3, kw3 = jax.random.split(key, 6)

    x = jax.random.normal(kx, (batch, semantic_emb_size), dtype=jnp.float32)
    w = init_projector_weight(kw, semantic_emb_size, num_classes)

    y = jax.block_until_ready(projector_forward(x, w))
    y_ref = jnp.dot(x, w.T, precision=lax.Precision.HIGHEST)
    assert y.shape == (batch, num_classes)
    assert jnp.allclose(y, y_ref, atol=1e-4, rtol=1e-4)

    # Weight-resident path at production-like shapes (W fetched once, batch
    # streamed in (tm, D) tiles; grid of 4 keeps both v7x TCs busy).
    B2, D2, C2 = 2048, 512, 256
    x2 = jax.random.normal(kx2, (B2, D2), dtype=jnp.float32)
    w2 = init_projector_weight(kw2, D2, C2)
    y2 = jax.block_until_ready(_projector_weight_resident(x2, w2))
    y2_ref = jnp.dot(x2, w2.T, precision=lax.Precision.HIGHEST)
    assert y2.shape == (B2, C2)
    assert jnp.allclose(y2, y2_ref, atol=1e-1, rtol=2e-2)

    # Fully tiled accumulator path (accumulates directly into o_ref).
    B3, D3, C3 = 1024, 2048, 1024
    x3 = jax.random.normal(kx3, (B3, D3), dtype=jnp.float32)
    w3 = init_projector_weight(kw3, D3, C3)
    y3 = jax.block_until_ready(_projector_tiled(x3, w3))
    y3_ref = jnp.dot(x3, w3.T, precision=lax.Precision.HIGHEST)
    assert y3.shape == (B3, C3)
    assert jnp.allclose(y3, y3_ref, atol=1e-1, rtol=2e-2)

    print("KERNEL_OK")
</pallas_src>

<mosaic_0001>
module attributes {stable_mosaic.version = 11 : i64} {
  func.func @_small_kernel(%arg0: memref<8x32xf32, #tpu.memory_space<vmem>>, %arg1: memref<4x32xf32, #tpu.memory_space<vmem>>, %arg2: memref<8x4xf32, #tpu.memory_space<vmem>>) attributes {dimension_semantics = [], scalar_prefetch = 0 : i64, scratch_operands = 0 : i64, tpu.core_type = #tpu.core_type<tc>} {
    %c0 = arith.constant 0 : index
    %c0_0 = arith.constant 0 : index
    %0 = vector.load %arg0[%c0, %c0_0] : memref<8x32xf32, #tpu.memory_space<vmem>>, vector<8x32xf32>
    %c0_1 = arith.constant 0 : index
    %c0_2 = arith.constant 0 : index
    %1 = vector.load %arg1[%c0_1, %c0_2] : memref<4x32xf32, #tpu.memory_space<vmem>>, vector<4x32xf32>
    %cst = arith.constant dense<0.000000e+00> : vector<8x4xf32>
    %2 = tpu.matmul %0, %1, %cst {dimension_numbers = #tpu.dot_dimension_numbers<[1], [1], [0], [0], [0, 0, 1, 0], [], []>} : vector<8x32xf32>, vector<4x32xf32>, vector<8x4xf32> -> vector<8x4xf32>
    %c0_3 = arith.constant 0 : index
    %c0_4 = arith.constant 0 : index
    %3 = vector.load %arg2[%c0_3, %c0_4] : memref<8x4xf32, #tpu.memory_space<vmem>>, vector<8x4xf32>
    tpu.vector_store %arg2[%c0_3, %c0_4], %2 {strides = array<i32>} : memref<8x4xf32, #tpu.memory_space<vmem>>, vector<8x4xf32>,
    return
  }
}

</mosaic_0001>

<llo_original>
// kernel: tpu_custom_call.1
$region0: #{tpu_custom_call.1}
  #allocation0 [shape = 'u32[]', space=smem, size = 0x4, offset = 0x4, fixed_abs, tag = 'smem constant byte address 0x4 - core index']
  #allocation1 [shape = 'u32[72,128]{1,0:T(1,128)}', space=vmem, size = 0x9000, scoped, tag = 'internal scratch']
  %s0 = inlined_call_operand.hbm [shape: f32[8,32], index: 0, kind: input, shape index: {}]
  %s1 = inlined_call_operand.hbm [shape: f32[4,32], index: 1, kind: input, shape index: {}]
  %s2 = inlined_call_operand.vmem [shape: f32[8,4], index: 2, kind: output, shape index: {}]
  %s3 = sld [smem:[#allocation0]]
  $region26: #{tpu_custom_call.1} parent=0
    _
  %s5 = ssub.s32 1, %s3
  %s6 = scalar_select 0, %s5, %s3
  $region1: #{tpu_custom_call.1} parent=0
    #allocation2 [shape = 'u8[4096]{0}', space=vmem, size = 0x1000, scoped, tag = 'input window, operand 0, single buffered']
    #allocation3 [shape = 's32[1]{0}', space=sflag, size = 0x4, scoped, tag = 'scoped memory for tpu_custom_call.1']
    #allocation4 [shape = 'u8[2048]{0}', space=vmem, size = 0x800, scoped, tag = 'input window, operand 1, single buffered']
    #allocation5 [shape = 's32[1]{0}', space=sflag, size = 0x4, scoped, tag = 'scoped memory for tpu_custom_call.1']
    %7 = vsyncpa [#allocation3], 0
    %8 = vsyncpa [#allocation5], 0
    // Predicated region
    $region2: #{tpu_custom_call.1} parent=1 // pred_check
      _
    $region3: #{tpu_custom_call.1} parent=1 // pred_check_branch
      %10 = sbr.rel (0) target = $region5
    $region4: #{tpu_custom_call.1} parent=1 // pred_region
      %12 = vsyncadd [#allocation3], 0
      %s14 = sshll.u32 %s0, 4
      %s15 = int_to_ptr.hbm [resolvable:$true] %s14
      %s16 = sshll.u32 [#allocation2], 4
      %s17 = int_to_ptr.vmem [resolvable:$true] %s16
      %19 = dma.hbm_to_vmem [thread:$0]  %s15, 128, %s17, [#allocation3]
    $region5: #{tpu_custom_call.1} parent=1 // pred_fallthru
      _
    // Predicated region
    $region6: #{tpu_custom_call.1} parent=1 // pred_check
      _
    $region7: #{tpu_custom_call.1} parent=1 // pred_check_branch
      %21 = sbr.rel (0) target = $region9
    $region8: #{tpu_custom_call.1} parent=1 // pred_region
      %23 = vsyncadd [#allocation5], 0
      %s25 = sshll.u32 %s1, 4
      %s26 = int_to_ptr.hbm [resolvable:$true] %s25
      %s27 = sshll.u32 [#allocation4], 4
      %s28 = int_to_ptr.vmem [resolvable:$true] %s27
      %30 = dma.hbm_to_vmem [thread:$0]  %s26, 64, %s28, [#allocation5]
    $region9: #{tpu_custom_call.1} parent=1 // pred_fallthru
      _
    // Predicated region
    $region10: #{tpu_custom_call.1} parent=1 // pred_check
      _
    $region11: #{tpu_custom_call.1} parent=1 // pred_check_branch
      %32 = sbr.rel (0) target = $region13
    $region12: #{tpu_custom_call.1} parent=1 // pred_region
      %34 = dma.done [#allocation3], 128
    $region13: #{tpu_custom_call.1} parent=1 // pred_fallthru
      _
    // Predicated region
    $region14: #{tpu_custom_call.1} parent=1 // pred_check
      _
    $region15: #{tpu_custom_call.1} parent=1 // pred_check_branch
      %36 = sbr.rel (0) target = $region17
    $region16: #{tpu_custom_call.1} parent=1 // pred_region
      %38 = dma.done [#allocation5], 64
    $region17: #{tpu_custom_call.1} parent=1 // pred_fallthru
      _
    %v39 = vld [vmem:[#allocation2] sm:$0xff]
    %v40 = vld [vmem:[#allocation4] sm:$0xf]
    %vm41 = vcmask 261120
    %v43 = vsel %vm41, %v39, 0
    %v46 = vsel %vm41, %v40, 0
    %48 = vmatpush.xpose.msra.mxu0 0.0
    %49 = vmatpush.xpose.msra.mxu0 0.0
    %50 = vmatpush.xpose.msra.mxu0 0.0
    %51 = vmatpush.xpose.msra.mxu0 0.0
    %52 = vmatpush.xpose.msra.mxu0 0.0
    %53 = vmatpush.xpose.msra.mxu0 0.0
    %54 = vmatpush.xpose.msra.mxu0 0.0
    %55 = vmatpush.xpose.msra.mxu0 0.0
    %56 = vmatpush.xpose.msra.mxu0 0.0
    %57 = vmatpush.xpose.msra.mxu0 0.0
    %58 = vmatpush.xpose.msra.mxu0 0.0
    %59 = vmatpush.xpose.msra.mxu0 0.0
    %60 = vmatpush.xpose.msra.mxu0 0.0
    %61 = vmatpush.xpose.msra.mxu0 0.0
    %62 = vmatpush.xpose.msra.mxu0 0.0
    %63 = vmatpush.xpose.msra.mxu0 %v46
    %64 = vmatmul.f32.gmra.mxu0 %v43
    %v65 = vpop.f32.mrf.mxu0
    %v66 = vadd.f32 0.0, %v65
    %67 = vdwg.mxu0
    %vm68 = vcmask 31744
    %69 = vst.msk [vmem:[%s2] sm:$0xff] %vm68, %v66
    // Predicated region
    $region18: #{tpu_custom_call.1} parent=1 // pred_check
      _
    $region19: #{tpu_custom_call.1} parent=1 // pred_check_branch
      %71 = sbr.rel (0) target = $region21
    $region20: #{tpu_custom_call.1} parent=1 // pred_region
      _
    $region21: #{tpu_custom_call.1} parent=1 // pred_fallthru
      _
    // Predicated region
    $region22: #{tpu_custom_call.1} parent=1 // pred_check
      _
    $region23: #{tpu_custom_call.1} parent=1 // pred_check_branch
      %73 = sbr.rel (0) target = $region25
    $region24: #{tpu_custom_call.1} parent=1 // pred_region
      _
    $region25: #{tpu_custom_call.1} parent=1 // pred_fallthru
      _
    %74 = vsyncpa [#allocation3], 1
    %75 = vsyncpa [#allocation5], 1

</llo_original>
